<compile_context>
chip_gen: v7x
topology: tpu7x:2x2x1
jax: 0.10.0
libtpu: 0.0.40
codegen_flags: <defaults>
</compile_context>

<pallas_src>
import functools

import jax
import jax.numpy as jnp
from jax.experimental import pallas as pl
from jax.experimental.pallas import tpu as pltpu


def _sdpa_kernel(q_ref, k_ref, v_ref, out_ref, attn_ref, *, inv_temp, compute_dtype):
    # Blocks are (1, q_tile, d_k) / (1, Lk, d_k) / (1, Lk, d_v); drop the leading 1.
    q = q_ref[0]
    k = k_ref[0]          # already in compute_dtype (cast once in the wrapper)
    v = v_ref[0]          # already in compute_dtype (cast once in the wrapper)

    # Fold 1/temperature into q (q_tile, d_k): cheaper than scaling the (q_tile, Lk) scores.
    q_s = (q.astype(jnp.float32) * inv_temp).astype(compute_dtype)

    # scores = (q / T) @ k^T with NO in-kernel transpose: contract d_k of both operands.
    scores = jax.lax.dot_general(
        q_s, k,
        dimension_numbers=(((1,), (1,)), ((), ())),
        preferred_element_type=jnp.float32)                   # (q_tile, Lk) f32

    # Numerically stable softmax in f32; reciprocal of the row-sum on the EUP (free slot).
    m = jnp.max(scores, axis=-1, keepdims=True)
    p = jnp.exp(scores - m)
    denom = jnp.sum(p, axis=-1, keepdims=True)
    attn = p * pl.reciprocal(denom, approx=True)              # (q_tile, Lk) f32
    # TODO(synk): on v6e/v7x a bf16 exp roughly doubles EUP throughput if the kernel
    # ever becomes EUP-bound (after the bf16-attn change shifts the roofline).

    # TODO(synk): training-mode nn.Dropout(attn_dropout) on the attention matrix is not
    # applied here (eval/inference semantics); could use pltpu.prng_seed + stateful_bernoulli.
    attn_c = attn.astype(compute_dtype)                       # single cast, reused for PV matmul
    if jnp.dtype(attn_ref.dtype) == jnp.dtype(compute_dtype):
        attn_ref[0] = attn_c
    else:
        attn_ref[0] = attn.astype(attn_ref.dtype)

    # output = attn @ v (contract Lk; operand orientation is already MXU-friendly).
    out = jax.lax.dot_general(
        attn_c, v,
        dimension_numbers=(((1,), (0,)), ((), ())),
        preferred_element_type=jnp.float32)                   # (q_tile, d_v) f32
    out_ref[0] = out.astype(out_ref.dtype)


def _vmem_capacity_bytes():
    """Physical VMEM of the local TPU, with a conservative fallback (v7x per-TC)."""
    try:
        info = pltpu.get_tpu_info()
        cap = getattr(info, "vmem_capacity_bytes", None)
        if cap:
            return int(cap)
    except Exception:
        pass
    return 64 << 20


def _pick_q_tile(Lq, Lk, Dk, Dv, in_bytes, kv_bytes, out_bytes, attn_bytes, budget_bytes):
    """Largest divisor of Lq (multiple of 8) whose per-step VMEM footprint fits the budget.

    Prefers multiples of 256 (v6e/v7x MXU width) among the fitting candidates.
    """
    if Lq % 8 != 0:
        return Lq  # block must equal the full dim; shapes this small always fit

    fixed = 2 * Lk * (Dk + Dv) * kv_bytes                     # double-buffered K/V

    def fits(t):
        per_step = (2 * t * Dk * in_bytes                     # q tile (double-buffered)
                    + 2 * t * Dv * out_bytes                  # out tile
                    + 2 * t * Lk * attn_bytes                 # attn tile
                    + 4 * t * Lk * 4)                         # f32 scores/exp/attn temporaries
        return fixed + per_step <= budget_bytes

    candidates = [t for t in range(8, Lq + 1, 8) if Lq % t == 0]
    fitting = [t for t in candidates if fits(t)]
    if fitting:
        mxu_pref = [t for t in fitting if t % 256 == 0]
        return max(mxu_pref) if mxu_pref else max(fitting)
    # Nothing fits the budget: take the smallest legal tile and let vmem_limit_bytes stretch.
    # TODO(synk): for very long context (Lk >= ~4K on v7x) add a kv grid axis
    # (two-pass or online softmax) so the (q_tile, Lk) temporaries stop scaling with Lk.
    return min(candidates)


def scaled_dot_product_attention(q, k, v, temperature, *,
                                 q_tile=None,
                                 compute_dtype=jnp.bfloat16,
                                 attn_dtype=None):
    """Pallas ScaledDotProductAttention.

    q: (B, H, Lq, Dk), k: (B, H, Lk, Dk), v: (B, H, Lk, Dv); temperature: python scalar
    (an __init__-time constant in the PyTorch module, so it is baked in statically).

    attn_dtype defaults to compute_dtype (bfloat16): the attn matrix is the dominant HBM
    writeback stream, so halving it is the main roofline lever. Pass attn_dtype=q.dtype
    (and compute_dtype=jnp.float32) for bit-closer parity with the PyTorch f32 reference.

    Returns (output (B, H, Lq, Dv) in q.dtype, attn (B, H, Lq, Lk) in attn_dtype).
    """
    B, H, Lq, Dk = q.shape
    Bk, Hk, Lk, Dk2 = k.shape
    Bv, Hv, Lkv, Dv = v.shape
    assert (B, H, Dk) == (Bk, Hk, Dk2) and (B, H, Lk) == (Bv, Hv, Lkv)

    if attn_dtype is None:
        attn_dtype = compute_dtype
    out_dtype = q.dtype

    # Flatten (batch, head) into one parallel grid axis.
    BH = B * H
    qf = q.reshape(BH, Lq, Dk)
    # Cast K/V once here (not per q-tile inside the kernel): halves their DMA bytes
    # and VMEM double-buffer footprint, removes repeated VPU casts of identical data.
    kf = k.reshape(BH, Lk, Dk).astype(compute_dtype)
    vf = v.reshape(BH, Lk, Dv).astype(compute_dtype)

    in_bytes = jnp.dtype(q.dtype).itemsize
    kv_bytes = jnp.dtype(compute_dtype).itemsize
    out_bytes = jnp.dtype(out_dtype).itemsize
    attn_bytes = jnp.dtype(attn_dtype).itemsize

    # VMEM budget: physical capacity (v5e/v6e 128 MiB, v7x 64 MiB) with headroom.
    vmem_cap = _vmem_capacity_bytes()
    vmem_limit = max(32 << 20, min(int(0.9 * vmem_cap), vmem_cap - (4 << 20)))
    tile_budget = int(0.6 * vmem_limit)   # leave room for compiler scratch / spills

    if q_tile is None:
        q_tile = _pick_q_tile(Lq, Lk, Dk, Dv,
                              in_bytes, kv_bytes, out_bytes, attn_bytes, tile_budget)
    assert q_tile == Lq or (Lq % q_tile == 0 and q_tile % 8 == 0), \
        "q_tile must divide Lq and be a multiple of 8 (or equal Lq)"

    kernel = functools.partial(_sdpa_kernel,
                               inv_temp=1.0 / float(temperature),
                               compute_dtype=compute_dtype)

    cost = pl.CostEstimate(
        flops=2 * BH * Lq * Lk * (Dk + Dv),                    # QK^T + PV
        transcendentals=BH * Lq * Lk,                          # exp over the score slab
        bytes_accessed=(BH * Lq * Dk * in_bytes                # q
                        + BH * Lk * Dk * kv_bytes              # k
                        + BH * Lk * Dv * kv_bytes              # v
                        + BH * Lq * Dv * out_bytes             # output
                        + BH * Lq * Lk * attn_bytes))          # attn (dominant)

    # TODO(synk): for production head dims < 128 (e.g. Dv=64), group g=128/Dv heads per
    # grid step to present a lane-dense (q_tile, g*Dv) output slab (masked-vst fix).
    grid = (BH, Lq // q_tile)
    out_f, attn_f = pl.pallas_call(
        kernel,
        out_shape=(jax.ShapeDtypeStruct((BH, Lq, Dv), out_dtype),
                   jax.ShapeDtypeStruct((BH, Lq, Lk), attn_dtype)),
        grid=grid,
        in_specs=[
            pl.BlockSpec((1, q_tile, Dk), lambda bh, qi: (bh, qi, 0)),   # q tile
            pl.BlockSpec((1, Lk, Dk),     lambda bh, qi: (bh, 0, 0)),    # k (reused over qi)
            pl.BlockSpec((1, Lk, Dv),     lambda bh, qi: (bh, 0, 0)),    # v (reused over qi)
        ],
        out_specs=(
            pl.BlockSpec((1, q_tile, Dv), lambda bh, qi: (bh, qi, 0)),   # output
            pl.BlockSpec((1, q_tile, Lk), lambda bh, qi: (bh, qi, 0)),   # attn
        ),
        compiler_params=pltpu.CompilerParams(
            # "arbitrary" on qi keeps one head's q-tiles on one core, so the constant
            # K/V block index across qi means K/V are DMA'd once per head, not per tile.
            dimension_semantics=("parallel", "arbitrary"),
            vmem_limit_bytes=vmem_limit),
        cost_estimate=cost,
    )(qf, kf, vf)

    return out_f.reshape(B, H, Lq, Dv), attn_f.reshape(B, H, Lq, Lk)


def sdpa_ref(q, k, v, temperature):
    """Pure-JAX reference matching the PyTorch forward (eval mode: dropout = identity)."""
    attn = jnp.einsum('bhqd,bhkd->bhqk', q / temperature, k)
    attn = jax.nn.softmax(attn, axis=-1)
    out = jnp.einsum('bhqk,bhkd->bhqd', attn, v)
    return out, attn


if __name__ == "__main__":
    B, H, L, Dk, Dv = 2, 2, 8, 32, 32       # batch, heads, seq, d_k, d_v
    temperature = float(Dk) ** 0.5

    key = jax.random.PRNGKey(0)
    kq, kk, kv = jax.random.split(key, 3)
    q = jax.random.normal(kq, (B, H, L, Dk), dtype=jnp.float32)
    k = jax.random.normal(kk, (B, H, L, Dk), dtype=jnp.float32)
    v = jax.random.normal(kv, (B, H, L, Dv), dtype=jnp.float32)

    out, attn = scaled_dot_product_attention(q, k, v, temperature)
    out, attn = jax.block_until_ready((out, attn))

    out_ref, attn_ref = sdpa_ref(q, k, v, temperature)
    assert out.shape == (B, H, L, Dv) and attn.shape == (B, H, L, L)

    # bf16 MXU operands (f32 accumulation), bf16 attn output, approx reciprocal
    # -> loosened tolerance vs the f32 reference.
    tol = 3e-2
    out_err = float(jnp.max(jnp.abs(out.astype(jnp.float32) - out_ref)))
    attn_err = float(jnp.max(jnp.abs(attn.astype(jnp.float32) - attn_ref)))
    assert jnp.allclose(out.astype(jnp.float32), out_ref, atol=tol, rtol=tol), \
        f"output max abs err {out_err}"
    assert jnp.allclose(attn.astype(jnp.float32), attn_ref, atol=tol, rtol=tol), \
        f"attn max abs err {attn_err}"
    print("KERNEL_OK")
</pallas_src>

<mosaic_0001>
module attributes {stable_mosaic.version = 11 : i64} {
  func.func @_sdpa_kernel(%arg0: i32, %arg1: i32, %arg2: memref<1x8x32xf32, #tpu.memory_space<vmem>>, %arg3: memref<1x8x32xbf16, #tpu.memory_space<vmem>>, %arg4: memref<1x8x32xbf16, #tpu.memory_space<vmem>>, %arg5: memref<1x8x32xf32, #tpu.memory_space<vmem>>, %arg6: memref<1x8x8xbf16, #tpu.memory_space<vmem>>) attributes {dimension_semantics = [#tpu.dimension_semantics<parallel>, #tpu.dimension_semantics<arbitrary>], iteration_bounds = array<i64: 4, 1>, scalar_prefetch = 0 : i64, scratch_operands = 0 : i64, tpu.core_type = #tpu.core_type<tc>, window_params = [{transform_indices = @transform_0, window_bounds = array<i64: 1, 8, 32>}, {transform_indices = @transform_1, window_bounds = array<i64: 1, 8, 32>}, {transform_indices = @transform_2, window_bounds = array<i64: 1, 8, 32>}, {transform_indices = @transform_3, window_bounds = array<i64: 1, 8, 32>}, {transform_indices = @transform_4, window_bounds = array<i64: 1, 8, 8>}]} {
    %c0 = arith.constant 0 : index
    %c0_0 = arith.constant 0 : index
    %c0_1 = arith.constant 0 : index
    %0 = vector.load %arg2[%c0, %c0_0, %c0_1] : memref<1x8x32xf32, #tpu.memory_space<vmem>>, vector<1x8x32xf32>
    %1 = vector.shape_cast %0 : vector<1x8x32xf32> to vector<8x32xf32>
    %c0_2 = arith.constant 0 : index
    %c0_3 = arith.constant 0 : index
    %c0_4 = arith.constant 0 : index
    %2 = vector.load %arg3[%c0_2, %c0_3, %c0_4] : memref<1x8x32xbf16, #tpu.memory_space<vmem>>, vector<1x8x32xbf16>
    %3 = vector.shape_cast %2 : vector<1x8x32xbf16> to vector<8x32xbf16>
    %c0_5 = arith.constant 0 : index
    %c0_6 = arith.constant 0 : index
    %c0_7 = arith.constant 0 : index
    %4 = vector.load %arg4[%c0_5, %c0_6, %c0_7] : memref<1x8x32xbf16, #tpu.memory_space<vmem>>, vector<1x8x32xbf16>
    %5 = vector.shape_cast %4 : vector<1x8x32xbf16> to vector<8x32xbf16>
    %cst = arith.constant 0.176776692 : f32
    %6 = vector.broadcast %cst : f32 to vector<8x32xf32>
    %7 = arith.mulf %1, %6 : vector<8x32xf32>
    %8 = arith.truncf %7 : vector<8x32xf32> to vector<8x32xbf16>
    %cst_8 = arith.constant dense<0.000000e+00> : vector<8x8xf32>
    %9 = tpu.matmul %8, %3, %cst_8 {dimension_numbers = #tpu.dot_dimension_numbers<[1], [1], [0], [0], [0, 0, 1, 0], [], []>} : vector<8x32xbf16>, vector<8x32xbf16>, vector<8x8xf32> -> vector<8x8xf32>
    %cst_9 = arith.constant dense<0xFF800000> : vector<8xf32>
    %10 = vector.multi_reduction <maximumf>, %9, %cst_9 [1] : vector<8x8xf32> to vector<8xf32>
    %11 = vector.shape_cast %10 : vector<8xf32> to vector<8x1xf32>
    %12 = vector.broadcast %11 : vector<8x1xf32> to vector<8x8xf32>
    %13 = arith.subf %9, %12 : vector<8x8xf32>
    %14 = math.exp %13 : vector<8x8xf32>
    %cst_10 = arith.constant dense<0.000000e+00> : vector<8xf32>
    %15 = vector.multi_reduction <add>, %14, %cst_10 [1] : vector<8x8xf32> to vector<8xf32>
    %16 = vector.shape_cast %15 : vector<8xf32> to vector<8x1xf32>
    %17 = tpu.reciprocal %16 {approx = true} : vector<8x1xf32> -> vector<8x1xf32>
    %18 = vector.broadcast %17 : vector<8x1xf32> to vector<8x8xf32>
    %19 = arith.mulf %14, %18 : vector<8x8xf32>
    %20 = arith.truncf %19 : vector<8x8xf32> to vector<8x8xbf16>
    %c0_11 = arith.constant 0 : index
    %c0_12 = arith.constant 0 : index
    %c0_13 = arith.constant 0 : index
    %21 = vector.load %arg6[%c0_11, %c0_12, %c0_13] : memref<1x8x8xbf16, #tpu.memory_space<vmem>>, vector<1x8x8xbf16>
    %22 = vector.shape_cast %21 : vector<1x8x8xbf16> to vector<8x8xbf16>
    %23 = vector.shape_cast %20 : vector<8x8xbf16> to vector<1x8x8xbf16>
    tpu.vector_store %arg6[%c0_11, %c0_12, %c0_13], %23 {strides = array<i32>} : memref<1x8x8xbf16, #tpu.memory_space<vmem>>, vector<1x8x8xbf16>,
    %cst_14 = arith.constant dense<0.000000e+00> : vector<8x32xf32>
    %24 = tpu.matmul %20, %5, %cst_14 {dimension_numbers = #tpu.dot_dimension_numbers<[1], [0], [0], [1], [0, 0, 1, 1], [], []>} : vector<8x8xbf16>, vector<8x32xbf16>, vector<8x32xf32> -> vector<8x32xf32>
    %c0_15 = arith.constant 0 : index
    %c0_16 = arith.constant 0 : index
    %c0_17 = arith.constant 0 : index
    %25 = vector.load %arg5[%c0_15, %c0_16, %c0_17] : memref<1x8x32xf32, #tpu.memory_space<vmem>>, vector<1x8x32xf32>
    %26 = vector.shape_cast %25 : vector<1x8x32xf32> to vector<8x32xf32>
    %27 = vector.shape_cast %24 : vector<8x32xf32> to vector<1x8x32xf32>
    tpu.vector_store %arg5[%c0_15, %c0_16, %c0_17], %27 {strides = array<i32>} : memref<1x8x32xf32, #tpu.memory_space<vmem>>, vector<1x8x32xf32>,
    return
  }
  func.func @transform_0(%arg0: i32, %arg1: i32) -> (i32, i32, i32) {
    %c0_i32 = arith.constant 0 : i32
    %c0_i32_0 = arith.constant 0 : i32
    return %arg0, %arg1, %c0_i32 : i32, i32, i32
  }
  func.func @transform_1(%arg0: i32, %arg1: i32) -> (i32, i32, i32) {
    %c0_i32 = arith.constant 0 : i32
    %c0_i32_0 = arith.constant 0 : i32
    %c0_i32_1 = arith.constant 0 : i32
    return %arg0, %c0_i32, %c0_i32_0 : i32, i32, i32
  }
  func.func @transform_2(%arg0: i32, %arg1: i32) -> (i32, i32, i32) {
    %c0_i32 = arith.constant 0 : i32
    %c0_i32_0 = arith.constant 0 : i32
    %c0_i32_1 = arith.constant 0 : i32
    return %arg0, %c0_i32, %c0_i32_0 : i32, i32, i32
  }
  func.func @transform_3(%arg0: i32, %arg1: i32) -> (i32, i32, i32) {
    %c0_i32 = arith.constant 0 : i32
    %c0_i32_0 = arith.constant 0 : i32
    return %arg0, %arg1, %c0_i32 : i32, i32, i32
  }
  func.func @transform_4(%arg0: i32, %arg1: i32) -> (i32, i32, i32) {
    %c0_i32 = arith.constant 0 : i32
    %c0_i32_0 = arith.constant 0 : i32
    return %arg0, %arg1, %c0_i32 : i32, i32, i32
  }
}

</mosaic_0001>

<llo_original>
// kernel: tpu_custom_call.1
$region0: #{tpu_custom_call.1}
  #allocation0 [shape = 'u32[]', space=smem, size = 0x4, offset = 0x4, fixed_abs, tag = 'smem constant byte address 0x4 - core index']
  #allocation1 [shape = 'u32[144,128]{1,0:T(1,128)}', space=vmem, size = 0x12000, scoped, tag = 'internal scratch']
  %s0 = inlined_call_operand.hbm [shape: f32[4,8,32], index: 0, kind: input, shape index: {}]
  %s1 = inlined_call_operand.hbm [shape: bf16[4,8,32], index: 1, kind: input, shape index: {}]
  %s2 = inlined_call_operand.hbm [shape: bf16[4,8,32], index: 2, kind: input, shape index: {}]
  %s3 = inlined_call_operand.hbm [shape: f32[4,8,32], index: 3, kind: output, shape index: {0}]
  %s4 = inlined_call_operand.hbm [shape: bf16[4,8,8], index: 4, kind: output, shape index: {1}]
  %5 = xla_tuple %s3, %s4
  %s6 = sld [smem:[#allocation0]]
  $region65: #{tpu_custom_call.1} parent=0
    _
  %s8 = ssub.s32 1, %s6
  %s9 = scalar_select 0, %s8, %s6
  $region1: #{tpu_custom_call.1} parent=0
    #allocation2 [shape = 'u8[8192]{0}', space=vmem, size = 0x2000, scoped, tag = 'input window, operand 0']
    #allocation3 [shape = 's32[2]{0}', space=sflag, size = 0x8, scoped, tag = 'scoped memory for tpu_custom_call.1']
    #allocation4 [shape = 's32[2]{0}', space=sflag, size = 0x8, scoped, tag = 'scoped memory for tpu_custom_call.1']
    #allocation5 [shape = 'u8[4096]{0}', space=vmem, size = 0x1000, scoped, tag = 'input window, operand 1']
    #allocation6 [shape = 's32[2]{0}', space=sflag, size = 0x8, scoped, tag = 'scoped memory for tpu_custom_call.1']
    #allocation7 [shape = 'u8[4096]{0}', space=vmem, size = 0x1000, scoped, tag = 'input window, operand 2']
    #allocation8 [shape = 'u8[8192]{0}', space=vmem, size = 0x2000, scoped, tag = 'output window, operand 0']
    #allocation9 [shape = 'u8[4096]{0}', space=vmem, size = 0x1000, scoped, tag = 'output window, operand 1']
    #allocation10 [shape = 's32[2]{0}', space=sflag, size = 0x8, scoped, tag = 'scoped memory for tpu_custom_call.1']
    %10 = vsyncpa [#allocation3], 0
    %s11 = scalar_lea.sflag [#allocation3], 1
    %12 = vsyncpa %s11, 0
    %13 = vsyncpa [#allocation6], 0
    %s14 = scalar_lea.sflag [#allocation6], 1
    %15 = vsyncpa %s14, 0
    %16 = vsyncpa [#allocation4], 0
    %s17 = scalar_lea.sflag [#allocation4], 1
    %18 = vsyncpa %s17, 0
    %19 = vsyncpa [#allocation10], 0
    %s20 = scalar_lea.sflag [#allocation10], 1
    %21 = vsyncpa %s20, 0
    loop: start=0, step=1, limit=6
    $region2: #{tpu_custom_call.1} parent=1 // loop_pre_header
      _
    $region3: #{tpu_custom_call.1} parent=1 // loop_header
      %s23 = sphi 0, %s27
      %p24 = scmp.ge.s32.totalorder %s23, 6
      %s30 = sphi 0, %s42
      %s31 = sphi 0, %s38
      %s32 = sphi 0, %s30
      %s33 = sphi 0, %s31
      %s34 = sphi 0, %s32
      %s35 = sphi 0, %s33
      %s47 = sphi 0, %s49
      %s50 = sphi 0, %s47
      %s51 = sphi 0, %s50
      %s67 = sphi 0, %s51
      %s73 = sphi 0, %s75
      %s76 = sphi 0, %s73
      %s77 = sphi 0, %s76
      %s93 = sphi 0, %s77
      %s99 = sphi 0, %s101
      %s102 = sphi 0, %s99
      %s103 = sphi 0, %s102
      %s119 = sphi 0, %s103
      %s127 = sphi 0, %s129
      %s130 = sphi 0, %s127
      %s131 = sphi 0, %s130
      %s147 = sphi 0, %s131
      %s155 = sphi 0, %s157
      %s158 = sphi 0, %s155
      %s159 = sphi 0, %s158
      %s175 = sphi 0, %s159
    $region4: #{tpu_custom_call.1} parent=1 // loop_header_branch
      %26 = sbr.rel (%p24) target = $region8
    $region5: #{tpu_custom_call.1} parent=1 // loop_body
      %s28 = ssub.s32 %s23, 1
      %s29 = ssub.s32 %s23, 2
      %s36 = sadd.s32 1, %s31
      %p37 = scmp.ge.s32.totalorder %s36, 1
      %s38 = scalar_select %p37, 0, %s36
      %s39 = sadd.s32 1, %s30
      %s40 = scalar_select %p37, %s39, %s30
      %p41 = scmp.ge.s32.totalorder %s40, 4
      %s42 = scalar_select %p41, 0, %s40
      %s43 = ssub.s32 %s30, %s42
      %s44 = ssub.s32 %s31, %s38
      %s45 = sor.u32 %s43, %s44
      %p46 = scmp.eq.s32.totalorder %s45, 0
      %s48 = sadd.s32 %s47, 1
      %s49 = scalar_select %p46, %s47, %s48
      %p52 = pneg %p46
      %p53 = scmp.eq.s32.totalorder %s23, 3
      %p54 = por %p52, %p53
      %p55 = scmp.ne.s32.totalorder %s47, %s50
      %p56 = scmp.eq.s32.totalorder %s23, 0
      %p57 = por %p55, %p56
      %p58 = scmp.ne.s32.totalorder %s47, %s50
      %p59 = scmp.eq.s32.totalorder %s28, 3
      %p60 = por %p58, %p59
      %p61 = scmp.ne.s32.totalorder %s50, %s51
      %p62 = scmp.eq.s32.totalorder %s28, 0
      %p63 = por %p61, %p62
      %p64 = scmp.ne.s32.totalorder %s50, %s51
      %p65 = scmp.eq.s32.totalorder %s29, 3
      %p66 = por %p64, %p65
      %p68 = scmp.ne.s32.totalorder %s51, %s67
      %p69 = scmp.eq.s32.totalorder %s29, 0
      %p70 = por %p68, %p69
      %s71 = ssub.s32 %s30, %s42
      %p72 = scmp.eq.s32.totalorder %s71, 0
      %s74 = sadd.s32 %s73, 1
      %s75 = scalar_select %p72, %s73, %s74
      %p78 = pneg %p72
      %p79 = scmp.eq.s32.totalorder %s23, 3
      %p80 = por %p78, %p79
      %p81 = scmp.ne.s32.totalorder %s73, %s76
      %p82 = scmp.eq.s32.totalorder %s23, 0
      %p83 = por %p81, %p82
      %p84 = scmp.ne.s32.totalorder %s73, %s76
      %p85 = scmp.eq.s32.totalorder %s28, 3
      %p86 = por %p84, %p85
      %p87 = scmp.ne.s32.totalorder %s76, %s77
      %p88 = scmp.eq.s32.totalorder %s28, 0
      %p89 = por %p87, %p88
      %p90 = scmp.ne.s32.totalorder %s76, %s77
      %p91 = scmp.eq.s32.totalorder %s29, 3
      %p92 = por %p90, %p91
      %p94 = scmp.ne.s32.totalorder %s77, %s93
      %p95 = scmp.eq.s32.totalorder %s29, 0
      %p96 = por %p94, %p95
      %s97 = ssub.s32 %s30, %s42
      %p98 = scmp.eq.s32.totalorder %s97, 0
      %s100 = sadd.s32 %s99, 1
      %s101 = scalar_select %p98, %s99, %s100
      %p104 = pneg %p98
      %p105 = scmp.eq.s32.totalorder %s23, 3
      %p106 = por %p104, %p105
      %p107 = scmp.ne.s32.totalorder %s99, %s102
      %p108 = scmp.eq.s32.totalorder %s23, 0
      %p109 = por %p107, %p108
      %p110 = scmp.ne.s32.totalorder %s99, %s102
      %p111 = scmp.eq.s32.totalorder %s28, 3
      %p112 = por %p110, %p111
      %p113 = scmp.ne.s32.totalorder %s102, %s103
      %p114 = scmp.eq.s32.totalorder %s28, 0
      %p115 = por %p113, %p114
      %p116 = scmp.ne.s32.totalorder %s102, %s103
      %p117 = scmp.eq.s32.totalorder %s29, 3
      %p118 = por %p116, %p117
      %p120 = scmp.ne.s32.totalorder %s103, %s119
      %p121 = scmp.eq.s32.totalorder %s29, 0
      %p122 = por %p120, %p121
      %s123 = ssub.s32 %s30, %s42
      %s124 = ssub.s32 %s31, %s38
      %s125 = sor.u32 %s123, %s124
      %p126 = scmp.eq.s32.totalorder %s125, 0
      %s128 = sadd.s32 %s127, 1
      %s129 = scalar_select %p126, %s127, %s128
      %p132 = pneg %p126
      %p133 = scmp.eq.s32.totalorder %s23, 3
      %p134 = por %p132, %p133
      %p135 = scmp.ne.s32.totalorder %s127, %s130
      %p136 = scmp.eq.s32.totalorder %s23, 0
      %p137 = por %p135, %p136
      %p138 = scmp.ne.s32.totalorder %s127, %s130
      %p139 = scmp.eq.s32.totalorder %s28, 3
      %p140 = por %p138, %p139
      %p141 = scmp.ne.s32.totalorder %s130, %s131
      %p142 = scmp.eq.s32.totalorder %s28, 0
      %p143 = por %p141, %p142
      %p144 = scmp.ne.s32.totalorder %s130, %s131
      %p145 = scmp.eq.s32.totalorder %s29, 3
      %p146 = por %p144, %p145
      %p148 = scmp.ne.s32.totalorder %s131, %s147
      %p149 = scmp.eq.s32.totalorder %s29, 0
      %p150 = por %p148, %p149
      %s151 = ssub.s32 %s30, %s42
      %s152 = ssub.s32 %s31, %s38
      %s153 = sor.u32 %s151, %s152
      %p154 = scmp.eq.s32.totalorder %s153, 0
      %s156 = sadd.s32 %s155, 1
      %s157 = scalar_select %p154, %s155, %s156
      %p160 = pneg %p154
      %p161 = scmp.eq.s32.totalorder %s23, 3
      %p162 = por %p160, %p161
      %p163 = scmp.ne.s32.totalorder %s155, %s158
      %p164 = scmp.eq.s32.totalorder %s23, 0
      %p165 = por %p163, %p164
      %p166 = scmp.ne.s32.totalorder %s155, %s158
      %p167 = scmp.eq.s32.totalorder %s28, 3
      %p168 = por %p166, %p167
      %p169 = scmp.ne.s32.totalorder %s158, %s159
      %p170 = scmp.eq.s32.totalorder %s28, 0
      %p171 = por %p169, %p170
      %p172 = scmp.ne.s32.totalorder %s158, %s159
      %p173 = scmp.eq.s32.totalorder %s29, 3
      %p174 = por %p172, %p173
      %p176 = scmp.ne.s32.totalorder %s159, %s175
      %p177 = scmp.eq.s32.totalorder %s29, 0
      %p178 = por %p176, %p177
      %p179 = scmp.le.s32.totalorder 1, %s23
      %p180 = scmp.lt.s32.totalorder %s23, 5
      %p181 = pnand %p179, %p180
      %p182 = pneg %p181
      // Predicated region
      $region9: #{tpu_custom_call.1} parent=5 // pred_check
        _
      $region10: #{tpu_custom_call.1} parent=5 // pred_check_branch
        %184 = sbr.rel (%p181) target = $region12
      $region11: #{tpu_custom_call.1} parent=5 // pred_region
        %s185 = ssub.s32 %s23, 1
      $region12: #{tpu_custom_call.1} parent=5 // pred_fallthru
        _
      %p186 = scmp.lt.s32.totalorder %s23, 4
      // Predicated region
      $region13: #{tpu_custom_call.1} parent=5 // pred_check
        %p187 = pneg %p186
      $region14: #{tpu_custom_call.1} parent=5 // pred_check_branch
        %189 = sbr.rel (%p187) target = $region16
      $region15: #{tpu_custom_call.1} parent=5 // pred_region
        // Predicated region
        $region17: #{tpu_custom_call.1} parent=15 // pred_check
          %p190 = pneg %p57
        $region18: #{tpu_custom_call.1} parent=15 // pred_check_branch
          %192 = sbr.rel (%p190) target = $region20
        $region19: #{tpu_custom_call.1} parent=15 // pred_region
          %s193 = sand.u32 %s47, 1
          %s194 = scalar_lea.sflag [#allocation3], %s193
          %s195 = sand.u32 %s47, 1
          %s196 = smul.addr %s195, 8
          %s197 = scalar_lea.vmem [#allocation2], %s196
          %s199 = ssub.s32 128, 128
          %200 = vsyncadd %s194, %s199
          %s201 = sadd.s32 %s31, %s30
          %s202 = smul.addr %s201, 128
          %s203 = scalar_lea.hbm %s0, %s202
          %s205 = sshll.u32 %s197, 4
          %s206 = int_to_ptr.vmem [resolvable:$true] %s205
          %208 = dma.hbm_to_vmem [thread:$0]  %s203, 128, %s206, %s194
        $region20: #{tpu_custom_call.1} parent=15 // pred_fallthru
          _
        // Predicated region
        $region21: #{tpu_custom_call.1} parent=15 // pred_check
          %p209 = pneg %p83
        $region22: #{tpu_custom_call.1} parent=15 // pred_check_branch
          %211 = sbr.rel (%p209) target = $region24
        $region23: #{tpu_custom_call.1} parent=15 // pred_region
          %s212 = sand.u32 %s23, 1
          %s213 = scalar_lea.sflag [#allocation6], %s212
          %s214 = sand.u32 %s73, 1
          %s215 = smul.addr %s214, 4
          %s216 = scalar_lea.vmem [#allocation5], %s215
          %s218 = ssub.s32 64, 64
          %219 = vsyncadd %s213, %s218
          %s220 = smul.addr %s30, 64
          %s221 = scalar_lea.hbm %s1, %s220
          %s223 = sshll.u32 %s216, 4
          %s224 = int_to_ptr.vmem [resolvable:$true] %s223
          %226 = dma.hbm_to_vmem [thread:$0]  %s221, 64, %s224, %s213
        $region24: #{tpu_custom_call.1} parent=15 // pred_fallthru
          _
        // Predicated region
        $region25: #{tpu_custom_call.1} parent=15 // pred_check
          %p227 = pneg %p109
        $region26: #{tpu_custom_call.1} parent=15 // pred_check_branch
          %229 = sbr.rel (%p227) target = $region28
        $region27: #{tpu_custom_call.1} parent=15 // pred_region
          %s230 = sand.u32 %s23, 1
          %s231 = scalar_lea.sflag [#allocation6], %s230
          %s232 = sand.u32 %s99, 1
          %s233 = smul.addr %s232, 4
          %s234 = scalar_lea.vmem [#allocation7], %s233
          %s236 = ssub.s32 64, 64
          %237 = vsyncadd %s231, %s236
          %s238 = smul.addr %s30, 64
          %s239 = scalar_lea.hbm %s2, %s238
          %s241 = sshll.u32 %s234, 4
          %s242 = int_to_ptr.vmem [resolvable:$true] %s241
          %244 = dma.hbm_to_vmem [thread:$0]  %s239, 64, %s242, %s231
        $region28: #{tpu_custom_call.1} parent=15 // pred_fallthru
          _
      $region16: #{tpu_custom_call.1} parent=5 // pred_fallthru
        _
      %p245 = scmp.le.s32.totalorder 1, %s23
      %p246 = scmp.lt.s32.totalorder %s23, 5
      %p247 = pnand %p245, %p246
      %p248 = pneg %p247
      // Predicated region
      $region29: #{tpu_custom_call.1} parent=5 // pred_check
        _
      $region30: #{tpu_custom_call.1} parent=5 // pred_check_branch
        %250 = sbr.rel (%p247) target = $region32
      $region31: #{tpu_custom_call.1} parent=5 // pred_region
        %s251 = ssub.s32 %s23, 1
        %s252 = sand.u32 %s50, 1
        %s253 = scalar_lea.sflag [#allocation3], %s252
        %s254 = sand.u32 %s50, 1
        %s255 = smul.addr %s254, 8
        %s256 = scalar_lea.vmem [#allocation2], %s255
        // Predicated region
        $region33: #{tpu_custom_call.1} parent=31 // pred_check
          %p257 = pneg %p63
        $region34: #{tpu_custom_call.1} parent=31 // pred_check_branch
          %259 = sbr.rel (%p257) target = $region36
        $region35: #{tpu_custom_call.1} parent=31 // pred_region
          %260 = dma.done %s253, 128
        $region36: #{tpu_custom_call.1} parent=31 // pred_fallthru
          _
        %s261 = sand.u32 %s28, 1
        %s262 = scalar_lea.sflag [#allocation6], %s261
        %s263 = sand.u32 %s76, 1
        %s264 = smul.addr %s263, 4
        %s265 = scalar_lea.vmem [#allocation5], %s264
        // Predicated region
        $region37: #{tpu_custom_call.1} parent=31 // pred_check
          %p266 = pneg %p89
        $region38: #{tpu_custom_call.1} parent=31 // pred_check_branch
          %268 = sbr.rel (%p266) target = $region40
        $region39: #{tpu_custom_call.1} parent=31 // pred_region
          %269 = dma.done %s262, 64
        $region40: #{tpu_custom_call.1} parent=31 // pred_fallthru
          _
        %s270 = sand.u32 %s28, 1
        %s271 = scalar_lea.sflag [#allocation6], %s270
        %s272 = sand.u32 %s102, 1
        %s273 = smul.addr %s272, 4
        %s274 = scalar_lea.vmem [#allocation7], %s273
        // Predicated region
        $region41: #{tpu_custom_call.1} parent=31 // pred_check
          %p275 = pneg %p115
        $region42: #{tpu_custom_call.1} parent=31 // pred_check_branch
          %277 = sbr.rel (%p275) target = $region44
        $region43: #{tpu_custom_call.1} parent=31 // pred_region
          %278 = dma.done %s271, 64
        $region44: #{tpu_custom_call.1} parent=31 // pred_fallthru
          _
        %s279 = sand.u32 %s50, 1
        %s280 = scalar_lea.sflag [#allocation3], %s279
        %s281 = sand.u32 %s50, 1
        %s282 = smul.addr %s281, 8
        %s283 = scalar_lea.vmem [#allocation2], %s282
        %p284 = pneg %p63
        %p285 = pneg %p60
        %s286 = sand.u32 %s28, 1
        %s287 = scalar_lea.sflag [#allocation6], %s286
        %s288 = sand.u32 %s76, 1
        %s289 = smul.addr %s288, 4
        %s290 = scalar_lea.vmem [#allocation5], %s289
        %p291 = pneg %p89
        %p292 = pneg %p86
        %s293 = sand.u32 %s28, 1
        %s294 = scalar_lea.sflag [#allocation6], %s293
        %s295 = sand.u32 %s102, 1
        %s296 = smul.addr %s295, 4
        %s297 = scalar_lea.vmem [#allocation7], %s296
        %p298 = pneg %p115
        %p299 = pneg %p112
        %p300 = pneg %p143
        %p301 = pneg %p140
        %s302 = sand.u32 %s130, 1
        %s303 = scalar_lea.sflag [#allocation4], %s302
        %s304 = sand.u32 %s130, 1
        %s305 = smul.addr %s304, 8
        %s306 = scalar_lea.vmem [#allocation8], %s305
        %p307 = pneg %p171
        %p308 = pneg %p168
        %s309 = sand.u32 %s158, 1
        %s310 = scalar_lea.sflag [#allocation10], %s309
        %s311 = sand.u32 %s158, 1
        %s312 = smul.addr %s311, 4
        %s313 = scalar_lea.vmem [#allocation9], %s312
        %v315 = vld [vmem:[%s256] sm:$0xff]
        %v316 = vld [vmem:[%s265] sm:$0xf]
        %v317 = vld [vmem:[%s274] sm:$0xf]
        %v318 = vmul.f32 %v315, 0.17677669
        %v319 = vpack.c.bf16 %v318, %v318
        %vm320 = vcmask 261120
        %v322 = vsel %vm320, %v319, 0
        %v325 = vsel %vm320, %v316, 0
        %327 = vmatprep.subr.bf16.mxu0 0
        %328 = vmatpush1.bf16.xpose.msra.mxu0 %v325
        %329 = vmatprep.subr.bf16.mxu0 0
        %330 = vmatpush1.bf16.xpose.msra.mxu0 0
        %331 = vmatprep.subr.bf16.mxu0 0
        %332 = vmatpush1.bf16.xpose.msra.mxu0 0
        %333 = vmatprep.subr.bf16.mxu0 0
        %334 = vmatpush1.bf16.xpose.msra.mxu0 0
        %335 = vmatprep.subr.bf16.mxu0 0
        %336 = vmatpush1.bf16.xpose.msra.mxu0 0
        %337 = vmatprep.subr.bf16.mxu0 0
        %338 = vmatpush1.bf16.xpose.msra.mxu0 0
        %339 = vmatprep.subr.bf16.mxu0 0
        %340 = vmatpush1.bf16.xpose.msra.mxu0 0
        %341 = vmatprep.subr.bf16.mxu0 0
        %342 = vmatpush1.bf16.xpose.msra.mxu0 0
        %343 = vmatprep.subr.bf16.mxu0 0
        %344 = vmatpush1.bf16.xpose.msra.mxu0 0
        %345 = vmatprep.subr.bf16.mxu0 0
        %346 = vmatpush1.bf16.xpose.msra.mxu0 0
        %347 = vmatprep.subr.bf16.mxu0 0
        %348 = vmatpush1.bf16.xpose.msra.mxu0 0
        %349 = vmatprep.subr.bf16.mxu0 0
        %350 = vmatpush1.bf16.xpose.msra.mxu0 0
        %351 = vmatprep.subr.bf16.mxu0 0
        %352 = vmatpush1.bf16.xpose.msra.mxu0 0
        %353 = vmatprep.subr.bf16.mxu0 0
        %354 = vmatpush1.bf16.xpose.msra.mxu0 0
        %355 = vmatprep.subr.bf16.mxu0 0
        %356 = vmatpush1.bf16.xpose.msra.mxu0 0
        %357 = vmatprep.subr.bf16.mxu0 0
        %358 = vmatpush1.bf16.xpose.msra.mxu0 0
        %359 = vmatprep.mubr.bf16.mxu0 0
        %360 = vmatmul.mubr.bf16.gmra.mrb[0].mxu0 %v322
        %v361 = vpop.f32.mrb[0].mxu0
        %v362 = vadd.f32 0.0, %v361
        %v363 = vpop.f32.mrb[0].mxu0
        %v364 = vpop.f32.mrb[0].mxu0
        %v365 = vpop.f32.mrb[0].mxu0
        %366 = vdwg.mxu0
        %vm367 = vcmask 64512
        %v368 = vsel %vm367, %v362, -inf
        %369 = vmax.xlane.f32.xlu0 %v368
        %v370 = vpop.xlane.xlu0 %369
        %v371 = vsub.f32 %v362, %v370
        %v372 = vmul.f32 %v371, 1.442695
        %v373 = vpow.pop %v372
        %v374 = vsel %vm367, %v373, 0.0
        %375 = vadd.xlane.f32.xlu0 %v374
        %v376 = vpop.xlane.xlu0 %375
        %v377 = vrcp.pop %v376
        %v378 = vmul.f32 %v373, %v377
        %v379 = vpack.c.bf16 %v378, %v378
        %vm380 = vcmask 60416
        %381 = vst.msk [vmem:[%s313] sm:$0xf] %vm380, %v379
        %v383 = vsel %vm367, %v379, 0
        %vm385 = vcmask 1043456
        %v387 = vsel %vm385, %v317, 0
        %389 = vmatprep.subr.bf16.mxu0 0
        %390 = vmatpush1.bf16.msra.mxu0 %v387
        %391 = vmatprep.subr.bf16.mxu0 0
        %392 = vmatpush1.bf16.msra.mxu0 0
        %393 = vmatprep.subr.bf16.mxu0 0
        %394 = vmatpush1.bf16.msra.mxu0 0
        %395 = vmatprep.subr.bf16.mxu0 0
        %396 = vmatpush1.bf16.msra.mxu0 0
        %397 = vmatprep.subr.bf16.mxu0 0
        %398 = vmatpush1.bf16.msra.mxu0 0
        %399 = vmatprep.subr.bf16.mxu0 0
        %400 = vmatpush1.bf16.msra.mxu0 0
        %401 = vmatprep.subr.bf16.mxu0 0
        %402 = vmatpush1.bf16.msra.mxu0 0
        %403 = vmatprep.subr.bf16.mxu0 0
        %404 = vmatpush1.bf16.msra.mxu0 0
        %405 = vmatprep.subr.bf16.mxu0 0
        %406 = vmatpush1.bf16.msra.mxu0 0
        %407 = vmatprep.subr.bf16.mxu0 0
        %408 = vmatpush1.bf16.msra.mxu0 0
        %409 = vmatprep.subr.bf16.mxu0 0
        %410 = vmatpush1.bf16.msra.mxu0 0
        %411 = vmatprep.subr.bf16.mxu0 0
        %412 = vmatpush1.bf16.msra.mxu0 0
        %413 = vmatprep.subr.bf16.mxu0 0
        %414 = vmatpush1.bf16.msra.mxu0 0
        %415 = vmatprep.subr.bf16.mxu0 0
        %416 = vmatpush1.bf16.msra.mxu0 0
        %417 = vmatprep.subr.bf16.mxu0 0
        %418 = vmatpush1.bf16.msra.mxu0 0
        %419 = vmatprep.subr.bf16.mxu0 0
        %420 = vmatpush1.bf16.msra.mxu0 0
        %421 = vmatprep.mubr.bf16.mxu0 0
        %422 = vmatmul.mubr.bf16.gmra.mrb[0].mxu0 %v383
        %v423 = vpop.f32.mrb[0].mxu0
        %v424 = vadd.f32 0.0, %v423
        %v425 = vpop.f32.mrb[0].mxu0
        %v426 = vpop.f32.mrb[0].mxu0
        %v427 = vpop.f32.mrb[0].mxu0
        %428 = vdwg.mxu0
        %429 = vst.msk [vmem:[%s306] sm:$0xff] %vm320, %v424
        %s430 = sand.u32 %s130, 1
        %s431 = scalar_lea.sflag [#allocation4], %s430
        %s432 = sand.u32 %s130, 1
        %s433 = smul.addr %s432, 8
        %s434 = scalar_lea.vmem [#allocation8], %s433
        %s435 = sand.u32 %s158, 1
        %s436 = scalar_lea.sflag [#allocation10], %s435
        %s437 = sand.u32 %s158, 1
        %s438 = smul.addr %s437, 4
        %s439 = scalar_lea.vmem [#allocation9], %s438
        // Predicated region
        $region45: #{tpu_custom_call.1} parent=31 // pred_check
          %p440 = pneg %p140
        $region46: #{tpu_custom_call.1} parent=31 // pred_check_branch
          %442 = sbr.rel (%p440) target = $region48
        $region47: #{tpu_custom_call.1} parent=31 // pred_region
          %s444 = ssub.s32 128, 128
          %445 = vsyncadd %s431, %s444
          %s446 = sadd.s32 %s33, %s32
          %s447 = smul.addr %s446, 128
          %s448 = scalar_lea.hbm %s3, %s447
          %s450 = sshll.u32 %s434, 4
          %s451 = int_to_ptr.vmem [resolvable:$true] %s450
          %453 = dma.vmem_to_hbm [thread:$0]  %s451, 128, %s448, %s431
        $region48: #{tpu_custom_call.1} parent=31 // pred_fallthru
          _
        // Predicated region
        $region49: #{tpu_custom_call.1} parent=31 // pred_check
          %p454 = pneg %p168
        $region50: #{tpu_custom_call.1} parent=31 // pred_check_branch
          %456 = sbr.rel (%p454) target = $region52
        $region51: #{tpu_custom_call.1} parent=31 // pred_region
          %s458 = ssub.s32 64, 64
          %459 = vsyncadd %s436, %s458
          %s460 = sadd.s32 %s33, %s32
          %s461 = smul.addr %s460, 64
          %s462 = scalar_lea.hbm %s4, %s461
          %s464 = sshll.u32 %s439, 4
          %s465 = int_to_ptr.vmem [resolvable:$true] %s464
          %467 = dma.vmem_to_hbm [thread:$0]  %s465, 64, %s462, %s436
        $region52: #{tpu_custom_call.1} parent=31 // pred_fallthru
          _
      $region32: #{tpu_custom_call.1} parent=5 // pred_fallthru
        _
      %p468 = scmp.le.s32.totalorder 2, %s23
      // Predicated region
      $region53: #{tpu_custom_call.1} parent=5 // pred_check
        %p469 = pneg %p468
      $region54: #{tpu_custom_call.1} parent=5 // pred_check_branch
        %471 = sbr.rel (%p469) target = $region56
      $region55: #{tpu_custom_call.1} parent=5 // pred_region
        %s472 = ssub.s32 %s23, 2
        // Predicated region
        $region57: #{tpu_custom_call.1} parent=55 // pred_check
          %p473 = pneg %p146
        $region58: #{tpu_custom_call.1} parent=55 // pred_check_branch
          %475 = sbr.rel (%p473) target = $region60
        $region59: #{tpu_custom_call.1} parent=55 // pred_region
          %s476 = sand.u32 %s131, 1
          %s477 = scalar_lea.sflag [#allocation4], %s476
          %s478 = sand.u32 %s131, 1
          %s479 = smul.addr %s478, 8
          %s480 = scalar_lea.vmem [#allocation8], %s479
          %481 = dma.done %s477, 128
        $region60: #{tpu_custom_call.1} parent=55 // pred_fallthru
          _
        // Predicated region
        $region61: #{tpu_custom_call.1} parent=55 // pred_check
          %p482 = pneg %p174
        $region62: #{tpu_custom_call.1} parent=55 // pred_check_branch
          %484 = sbr.rel (%p482) target = $region64
        $region63: #{tpu_custom_call.1} parent=55 // pred_region
          %s485 = sand.u32 %s159, 1
          %s486 = scalar_lea.sflag [#allocation10], %s485
          %s487 = sand.u32 %s159, 1
          %s488 = smul.addr %s487, 4
          %s489 = scalar_lea.vmem [#allocation9], %s488
          %490 = dma.done %s486, 64
        $region64: #{tpu_custom_call.1} parent=55 // pred_fallthru
          _
      $region56: #{tpu_custom_call.1} parent=5 // pred_fallthru
        _
    $region6: #{tpu_custom_call.1} parent=1 // loop_footer
      %s27 = sadd.s32 1, %s23
    $region7: #{tpu_custom_call.1} parent=1 // loop_footer_branch
      %22 = sbr.rel target = $region3
    $region8: #{tpu_custom_call.1} parent=1 // loop_exit
      _
    %491 = vsyncpa [#allocation3], 1
    %s492 = scalar_lea.sflag [#allocation3], 1
    %493 = vsyncpa %s492, 1
    %494 = vsyncpa [#allocation6], 1
    %s495 = scalar_lea.sflag [#allocation6], 1
    %496 = vsyncpa %s495, 1
    %497 = vsyncpa [#allocation4], 1
    %s498 = scalar_lea.sflag [#allocation4], 1
    %499 = vsyncpa %s498, 1
    %500 = vsyncpa [#allocation10], 1
    %s501 = scalar_lea.sflag [#allocation10], 1
    %502 = vsyncpa %s501, 1

</llo_original>
